<compile_context>
chip_gen: v5e
topology: v5e:2x2
jax: 0.10.0
libtpu: 0.0.40
codegen_flags: <defaults>
</compile_context>

<pallas_src>
import math

import jax
import jax.numpy as jnp
from jax.experimental import pallas as pl
from jax.experimental.pallas import tpu as pltpu


_VMEM_LIMIT_BYTES = 48 * 1024 * 1024    # < v7x 64 MiB physical, > default scoped limits
_COPY_BLOCK_BUDGET = 8 * 1024 * 1024    # per-block budget (~4x resident when double-buffered)
_TINY_SLAB_BYTES = 1 * 1024 * 1024      # below this, batch-block the slab transpose
_BATCH_BLOCK_BYTES = 4 * 1024 * 1024    # target padded block size for batch-blocked slabs


def _round_up(v, m):
    return ((v + m - 1) // m) * m


# ----------------------------------------------------------------------------
# Capability probes: run a tiny eager pallas_call once and cache the result.
# ----------------------------------------------------------------------------
_PROBE_CACHE = {}


def _nd_transpose_supported(perm):
    """True iff Mosaic lowers an in-kernel jnp.transpose with `perm` on 3-D."""
    perm = tuple(perm)
    hit = _PROBE_CACHE.get(perm)
    if hit is not None:
        return hit
    shape = (4, 8, 128)
    out_shape = tuple(shape[p] for p in perm)

    def _kern(x_ref, o_ref):
        o_ref[...] = jnp.transpose(x_ref[...], perm)

    ok = False
    try:
        x = jnp.arange(math.prod(shape), dtype=jnp.float32).reshape(shape)
        out = pl.pallas_call(
            _kern, out_shape=jax.ShapeDtypeStruct(out_shape, jnp.float32))(x)
        out = jax.block_until_ready(out)
        ok = bool(jnp.array_equal(out, jnp.transpose(x, perm)))
    except Exception:
        ok = False
    _PROBE_CACHE[perm] = ok
    return ok


# ----------------------------------------------------------------------------
# Kernel bodies.
# ----------------------------------------------------------------------------
def _copy_kernel(x_ref, o_ref):
    o_ref[...] = x_ref[...]


def _transpose2d_kernel(x_ref, o_ref):
    # (TM, TN) -> (TN, TM)
    o_ref[...] = x_ref[...].T


def _batched_transpose_kernel(x_ref, o_ref):
    # (TB, M, N) -> (TB, N, M)
    o_ref[...] = jnp.swapaxes(x_ref[...], 1, 2)


def _rev3_transpose_kernel(x_ref, o_ref):
    # (ta, Q, tb) -> (tb, Q, ta)
    o_ref[...] = jnp.transpose(x_ref[...], (2, 1, 0))


# ----------------------------------------------------------------------------
# Slab transpose of the last two axes: (B, M, N) -> (B, N, M).
# ----------------------------------------------------------------------------
def _pick_tile(dim, max_tile=1024):
    """Lane/sublane-legal tile: full extent, or a multiple of 128 <= max_tile."""
    if dim <= max_tile:
        return dim
    for t in range(max_tile, 127, -128):        # 1024, 896, ..., 128
        if dim % t == 0:
            return t                            # evenly dividing -> no ragged edge
    return max_tile                             # ragged edge: padded edge blocks


def _slab_transpose_tiled(x3d):
    Bt, M, N = x3d.shape
    itemsize = x3d.dtype.itemsize
    tm = _pick_tile(M)
    tn = _pick_tile(N)
    return pl.pallas_call(
        _transpose2d_kernel,
        out_shape=jax.ShapeDtypeStruct((Bt, N, M), x3d.dtype),
        grid_spec=pltpu.PrefetchScalarGridSpec(
            num_scalar_prefetch=0,
            grid=(Bt, pl.cdiv(M, tm), pl.cdiv(N, tn)),
            in_specs=[pl.BlockSpec((None, tm, tn), lambda b, i, j: (b, i, j))],
            out_specs=pl.BlockSpec((None, tn, tm), lambda b, i, j: (b, j, i)),
        ),
        compiler_params=pltpu.CompilerParams(
            # No accumulator: every (b, i, j) writes a distinct tile -> all
            # axes parallel so both v7x TensorCores contribute bandwidth.
            dimension_semantics=("parallel", "parallel", "parallel"),
            vmem_limit_bytes=_VMEM_LIMIT_BYTES),
        cost_estimate=pl.CostEstimate(
            flops=0, transcendentals=0, bytes_accessed=2 * x3d.size * itemsize),
    )(x3d)


def _slab_transpose_batched(x3d, pad_slab_bytes):
    """Batch-blocked slab transpose for tiny (M, N): amortizes per-step
    overhead and keeps DMA transactions large."""
    Bt, M, N = x3d.shape
    itemsize = x3d.dtype.itemsize
    tb = max(1, min(Bt, _BATCH_BLOCK_BYTES // pad_slab_bytes))
    return pl.pallas_call(
        _batched_transpose_kernel,
        out_shape=jax.ShapeDtypeStruct((Bt, N, M), x3d.dtype),
        grid_spec=pltpu.PrefetchScalarGridSpec(
            num_scalar_prefetch=0,
            grid=(pl.cdiv(Bt, tb),),
            in_specs=[pl.BlockSpec((tb, M, N), lambda b: (b, 0, 0))],
            out_specs=pl.BlockSpec((tb, N, M), lambda b: (b, 0, 0)),
        ),
        compiler_params=pltpu.CompilerParams(
            dimension_semantics=("parallel",),
            vmem_limit_bytes=_VMEM_LIMIT_BYTES),
        cost_estimate=pl.CostEstimate(
            flops=0, transcendentals=0, bytes_accessed=2 * x3d.size * itemsize),
    )(x3d)


def _batched_transpose_last2(x3d):
    """(B, M, N) -> (B, N, M)."""
    Bt, M, N = x3d.shape
    itemsize = x3d.dtype.itemsize
    # Per-slab VMEM footprint, accounting for (8, 128) layout padding on both
    # the input and the transposed output tile.
    pad_slab = max(_round_up(M, 8) * _round_up(N, 128),
                   _round_up(N, 8) * _round_up(M, 128)) * itemsize
    if (Bt > 1 and M * N * itemsize <= _TINY_SLAB_BYTES
            and pad_slab <= _BATCH_BLOCK_BYTES
            and _nd_transpose_supported((0, 2, 1))):
        try:
            return _slab_transpose_batched(x3d, pad_slab)
        except Exception:
            pass                                 # fall back to the proven path
    return _slab_transpose_tiled(x3d)


# ----------------------------------------------------------------------------
# Single-pass swap when dim1 is the LAST axis and dim0 is non-adjacent.
#   x viewed as (P, A, Q, B) -> (P, B, Q, A); one read + one write of HBM.
# ----------------------------------------------------------------------------
def _last_axis_swap_single_pass(x, d0):
    if not _nd_transpose_supported((2, 1, 0)):
        return None
    shape = x.shape
    nd = x.ndim
    P = math.prod(shape[:d0])
    A = shape[d0]
    Q = math.prod(shape[d0 + 1:nd - 1])
    B = shape[nd - 1]
    itemsize = x.dtype.itemsize

    Qp = _round_up(Q, 8)
    per_pair = (_COPY_BLOCK_BUDGET // itemsize) // Qp   # elems available for ta*tb
    if per_pair < 128:
        return None                                     # Q too large -> 2-pass path

    def _fits(ta, tb):
        # padded VMEM footprint of the larger of the in / out tiles
        return max(ta * _round_up(tb, 128), tb * _round_up(ta, 128)) <= per_pair

    def _cands(dim):
        # full extent (always legal) or a multiple of 128 (lane-legal on either side)
        c = [dim] if dim <= 1024 else []
        c += [t for t in (1024, 512, 256, 128) if t <= dim]
        return sorted(set(c), reverse=True)

    best = None
    for ta in _cands(A):
        for tb in _cands(B):
            if _fits(ta, tb) and (best is None or ta * tb > best[0]):
                best = (ta * tb, ta, tb)
    if best is None:
        return None
    _, ta, tb = best

    out_shape = shape[:d0] + (B,) + shape[d0 + 1:nd - 1] + (A,)
    try:
        out4 = pl.pallas_call(
            _rev3_transpose_kernel,
            out_shape=jax.ShapeDtypeStruct((P, B, Q, A), x.dtype),
            grid_spec=pltpu.PrefetchScalarGridSpec(
                num_scalar_prefetch=0,
                grid=(P, pl.cdiv(A, ta), pl.cdiv(B, tb)),
                in_specs=[pl.BlockSpec((None, ta, Q, tb),
                                       lambda p, i, j: (p, i, 0, j))],
                out_specs=pl.BlockSpec((None, tb, Q, ta),
                                       lambda p, i, j: (p, j, 0, i)),
            ),
            compiler_params=pltpu.CompilerParams(
                dimension_semantics=("parallel", "parallel", "parallel"),
                vmem_limit_bytes=_VMEM_LIMIT_BYTES),
            cost_estimate=pl.CostEstimate(
                flops=0, transcendentals=0, bytes_accessed=2 * x.size * itemsize),
        )(x.reshape(P, A, Q, B))
    except Exception:
        return None
    return out4.reshape(out_shape)


# ----------------------------------------------------------------------------
# Single-pass swap when NEITHER dim is the last axis (transpose-free copy).
#   x viewed as (P, A, Q, B, R) -> (P, B, Q, A, R); the a<->b swap lives
#   entirely in the out_spec index_map.
# ----------------------------------------------------------------------------
def _factor_lane_dense(R):
    """Factor R = r_hi * r_lo with r_lo biased toward a lane-friendly size."""
    for d in range(min(R, 1024), 127, -1):
        if R % d == 0:
            return R // d, d
    return 1, R


def _interior_swap_single_pass(x, d0, d1):
    shape = x.shape
    P = math.prod(shape[:d0])
    A = shape[d0]
    Q = math.prod(shape[d0 + 1:d1])
    B = shape[d1]
    R = math.prod(shape[d1 + 1:])
    itemsize = x.dtype.itemsize
    total_bytes = 2 * x.size * itemsize
    out_shape = (shape[:d0] + (shape[d1],) + shape[d0 + 1:d1]
                 + (shape[d0],) + shape[d1 + 1:])
    r_bytes = R * itemsize

    params = pltpu.CompilerParams(
        dimension_semantics=("parallel",) * 4,
        vmem_limit_bytes=_VMEM_LIMIT_BYTES)
    cost = pl.CostEstimate(flops=0, transcendentals=0, bytes_accessed=total_bytes)

    # Lane-dense variant: the whole (128-aligned) R group becomes the block's
    # last dim (unmasked vst, full lanes), and a Q-chunk fills the budget.
    if R % 128 == 0 and min(Q, 8) * r_bytes <= _COPY_BLOCK_BUDGET:
        qc_budget = _COPY_BLOCK_BUDGET // r_bytes
        qc = Q if Q <= qc_budget else (qc_budget // 8) * 8   # full Q or multiple of 8
        try:
            out4 = pl.pallas_call(
                _copy_kernel,
                out_shape=jax.ShapeDtypeStruct((P, B, Q, A * R), x.dtype),
                grid_spec=pltpu.PrefetchScalarGridSpec(
                    num_scalar_prefetch=0,
                    grid=(P, A, pl.cdiv(Q, qc), B),
                    in_specs=[pl.BlockSpec((None, None, qc, R),
                                           lambda p, a, k, b: (p, a, k, b))],
                    out_specs=pl.BlockSpec((None, None, qc, R),
                                           lambda p, a, k, b: (p, b, k, a)),
                ),
                compiler_params=params,
                cost_estimate=cost,
            )(x.reshape(P, A, Q, B * R))
            return out4.reshape(out_shape)
        except Exception:
            pass

    # General variant: 6-D view, full (r_hi, r_lo) trailing group per block
    # (full-extent last two dims -> always legal), Q-chunked.
    r_hi, r_lo = _factor_lane_dense(R)
    r_pad_bytes = _round_up(r_hi, 8) * _round_up(r_lo, 128) * itemsize
    if r_pad_bytes > _COPY_BLOCK_BUDGET:
        return None            # one R-slice overflows the budget -> generic path
    qc = min(Q, max(1, _COPY_BLOCK_BUDGET // r_pad_bytes))
    try:
        out6 = pl.pallas_call(
            _copy_kernel,
            out_shape=jax.ShapeDtypeStruct((P, B, Q, A, r_hi, r_lo), x.dtype),
            grid_spec=pltpu.PrefetchScalarGridSpec(
                num_scalar_prefetch=0,
                grid=(P, A, pl.cdiv(Q, qc), B),
                in_specs=[pl.BlockSpec((None, None, qc, None, r_hi, r_lo),
                                       lambda p, a, k, b: (p, a, k, b, 0, 0))],
                out_specs=pl.BlockSpec((None, None, qc, None, r_hi, r_lo),
                                       lambda p, a, k, b: (p, b, k, a, 0, 0)),
            ),
            compiler_params=params,
            cost_estimate=cost,
        )(x.reshape(P, A, Q, B, r_hi, r_lo))
    except Exception:
        return None
    return out6.reshape(out_shape)


# ----------------------------------------------------------------------------
# Glue: express x.transpose(dim0, dim1) with a minimal number of passes.
# ----------------------------------------------------------------------------
def _swap_suffix_groups(x, i, j):
    """Swap the contiguous dim groups x.shape[i:j] and x.shape[j:] via the slab
    transpose (reshape glue).  No-op if either group is empty."""
    shape = x.shape
    y_dims, z_dims = shape[i:j], shape[j:]
    if not y_dims or not z_dims:
        return x
    batch = math.prod(shape[:i])
    m = math.prod(y_dims)
    n = math.prod(z_dims)
    o3 = _batched_transpose_last2(x.reshape(batch, m, n))
    return o3.reshape(shape[:i] + z_dims + y_dims)


def pallas_transpose(x, dim0, dim1):
    """Equivalent of torch.Tensor.transpose(dim0, dim1)."""
    nd = x.ndim
    d0 = dim0 % nd
    d1 = dim1 % nd
    if d0 == d1:
        return x
    d0, d1 = min(d0, d1), max(d0, d1)

    if d1 < nd - 1:
        # Neither dim is the last axis: single transpose-free permuted copy.
        out = _interior_swap_single_pass(x, d0, d1)
        if out is not None:
            return out
    elif d0 == nd - 2:
        # Adjacent last two dims: one tiled / batch-blocked slab transpose.
        shape = x.shape
        bt = math.prod(shape[:d0])
        o3 = _batched_transpose_last2(x.reshape(bt, shape[d0], shape[d1]))
        return o3.reshape(shape[:d0] + (shape[d1], shape[d0]))
    else:
        # d1 is the last axis, d0 non-adjacent: single-pass when supported.
        out = _last_axis_swap_single_pass(x, d0)
        if out is not None:
            return out

    # Generic fallback: suffix-group passes (2 when only d1 is the last dim,
    # <= 4 otherwise).  Layout P | A | Q | B | R  ->  P | B | Q | A | R.
    p, q, r = d0, d1 - d0 - 1, nd - d1 - 1
    x = _swap_suffix_groups(x, p + 1 + q, p + 1 + q + 1)   # P A Q [B|R]  -> P A Q R B
    x = _swap_suffix_groups(x, p + 1, p + 1 + q + r)       # P A [QR|B]  -> P A B Q R
    x = _swap_suffix_groups(x, p, p + 1)                   # P [A|BQR]   -> P B Q R A
    x = _swap_suffix_groups(x, p + 1 + q, p + 1 + q + r)   # P B Q [R|A] -> P B Q A R
    return x


class Transpose:
    """JAX/Pallas mirror of fairseq.modules.utils.Transpose (no parameters)."""

    def __init__(self, dim0, dim1):
        self.dim0 = dim0
        self.dim1 = dim1

    def __call__(self, x):
        return pallas_transpose(x, self.dim0, self.dim1)


if __name__ == "__main__":
    key = jax.random.PRNGKey(0)
    k1, k2, k3 = jax.random.split(key, 3)

    x4 = jax.random.normal(k1, (2, 4, 16, 16), dtype=jnp.float32)
    x3 = jax.random.normal(k2, (2, 8, 32), dtype=jnp.float32)
    x5 = jax.random.normal(k3, (2, 3, 4, 8, 128), dtype=jnp.float32)

    cases = [
        (x4, 1, 2),    # interior swap, small R          -> 6-D permuted copy
        (x4, 0, 1),    # interior swap, R % 128 == 0     -> lane-dense 4-D copy
        (x5, 1, 3),    # interior swap, Q > 1, R = 128   -> lane-dense 4-D copy
        (x5, 1, 2),    # interior adjacent swap          -> lane-dense 4-D copy
        (x4, 2, 3),    # adjacent last two dims          -> batch-blocked slab transpose
        (x3, 1, 2),    # (B, T, C) -> (B, C, T)
        (x3, -1, -2),  # negative dims, same as above
        (x4, 0, 3),    # last axis, non-adjacent         -> single-pass (or 2-pass fallback)
        (x3, 0, 2),    # last axis, non-adjacent, 3-D
    ]

    ok = True
    for x, d0, d1 in cases:
        out = jax.block_until_ready(Transpose(d0, d1)(x))
        ref = jnp.swapaxes(x, d0, d1)
        if out.shape != ref.shape or out.dtype != ref.dtype:
            ok = False
        elif not bool(jnp.array_equal(out, ref)):
            ok = False

    print("KERNEL_OK" if ok else "KERNEL_MISMATCH")
</pallas_src>

<mosaic_0001>
module attributes {stable_mosaic.version = 11 : i64} {
  func.func @_copy_kernel(%arg0: i32, %arg1: i32, %arg2: i32, %arg3: i32, %arg4: memref<1x1x1x1x1x16xf32, #tpu.memory_space<vmem>>, %arg5: memref<1x1x1x1x1x16xf32, #tpu.memory_space<vmem>>) attributes {dimension_semantics = [#tpu.dimension_semantics<parallel>, #tpu.dimension_semantics<parallel>, #tpu.dimension_semantics<parallel>, #tpu.dimension_semantics<parallel>], iteration_bounds = array<i64: 2, 4, 1, 16>, scalar_prefetch = 0 : i64, scratch_operands = 0 : i64, tpu.core_type = #tpu.core_type<tc>, window_params = [{transform_indices = @transform_0, window_bounds = array<i64: 1, 1, 1, 1, 1, 16>}, {transform_indices = @transform_1, window_bounds = array<i64: 1, 1, 1, 1, 1, 16>}]} {
    %c0 = arith.constant 0 : index
    %c0_0 = arith.constant 0 : index
    %c0_1 = arith.constant 0 : index
    %c0_2 = arith.constant 0 : index
    %c0_3 = arith.constant 0 : index
    %c0_4 = arith.constant 0 : index
    %0 = vector.load %arg4[%c0, %c0_0, %c0_1, %c0_2, %c0_3, %c0_4] : memref<1x1x1x1x1x16xf32, #tpu.memory_space<vmem>>, vector<1x1x1x1x1x16xf32>
    %1 = vector.shape_cast %0 : vector<1x1x1x1x1x16xf32> to vector<1x1x16xf32>
    %c0_5 = arith.constant 0 : index
    %c0_6 = arith.constant 0 : index
    %c0_7 = arith.constant 0 : index
    %c0_8 = arith.constant 0 : index
    %c0_9 = arith.constant 0 : index
    %c0_10 = arith.constant 0 : index
    %2 = vector.load %arg5[%c0_5, %c0_6, %c0_7, %c0_8, %c0_9, %c0_10] : memref<1x1x1x1x1x16xf32, #tpu.memory_space<vmem>>, vector<1x1x1x1x1x16xf32>
    %3 = vector.shape_cast %2 : vector<1x1x1x1x1x16xf32> to vector<1x1x16xf32>
    %4 = vector.shape_cast %1 : vector<1x1x16xf32> to vector<1x1x1x1x1x16xf32>
    tpu.vector_store %arg5[%c0_5, %c0_6, %c0_7, %c0_8, %c0_9, %c0_10], %4 {strides = array<i32>} : memref<1x1x1x1x1x16xf32, #tpu.memory_space<vmem>>, vector<1x1x1x1x1x16xf32>,
    return
  }
  func.func @transform_0(%arg0: i32, %arg1: i32, %arg2: i32, %arg3: i32) -> (i32, i32, i32, i32, i32, i32) {
    %c0_i32 = arith.constant 0 : i32
    %c0_i32_0 = arith.constant 0 : i32
    %c0_i32_1 = arith.constant 0 : i32
    return %arg0, %arg1, %arg2, %arg3, %c0_i32, %c0_i32_0 : i32, i32, i32, i32, i32, i32
  }
  func.func @transform_1(%arg0: i32, %arg1: i32, %arg2: i32, %arg3: i32) -> (i32, i32, i32, i32, i32, i32) {
    %c0_i32 = arith.constant 0 : i32
    %c0_i32_0 = arith.constant 0 : i32
    %c0_i32_1 = arith.constant 0 : i32
    return %arg0, %arg3, %arg2, %arg1, %c0_i32, %c0_i32_0 : i32, i32, i32, i32, i32, i32
  }
}

module attributes {stable_mosaic.version = 11 : i64} {
  func.func @_kern(%arg0: memref<4x8x128xf32, #tpu.memory_space<vmem>>, %arg1: memref<4x128x8xf32, #tpu.memory_space<vmem>>) attributes {dimension_semantics = [], scalar_prefetch = 0 : i64, scratch_operands = 0 : i64, tpu.core_type = #tpu.core_type<tc>} {
    %c0 = arith.constant 0 : index
    %c0_0 = arith.constant 0 : index
    %c0_1 = arith.constant 0 : index
    %0 = vector.load %arg0[%c0, %c0_0, %c0_1] : memref<4x8x128xf32, #tpu.memory_space<vmem>>, vector<4x8x128xf32>
    %1 = tpu.transpose %0, [0, 2, 1] : vector<4x8x128xf32> -> vector<4x128x8xf32>
    %c0_2 = arith.constant 0 : index
    %c0_3 = arith.constant 0 : index
    %c0_4 = arith.constant 0 : index
    %2 = vector.load %arg1[%c0_2, %c0_3, %c0_4] : memref<4x128x8xf32, #tpu.memory_space<vmem>>, vector<4x128x8xf32>
    tpu.vector_store %arg1[%c0_2, %c0_3, %c0_4], %1 {strides = array<i32>} : memref<4x128x8xf32, #tpu.memory_space<vmem>>, vector<4x128x8xf32>,
    return
  }
}

module attributes {stable_mosaic.version = 11 : i64} {
  func.func @_transpose2d_kernel(%arg0: i32, %arg1: i32, %arg2: i32, %arg3: memref<1x16x16xf32, #tpu.memory_space<vmem>>, %arg4: memref<1x16x16xf32, #tpu.memory_space<vmem>>) attributes {dimension_semantics = [#tpu.dimension_semantics<parallel>, #tpu.dimension_semantics<parallel>, #tpu.dimension_semantics<parallel>], iteration_bounds = array<i64: 8, 1, 1>, scalar_prefetch = 0 : i64, scratch_operands = 0 : i64, tpu.core_type = #tpu.core_type<tc>, window_params = [{transform_indices = @transform_0, window_bounds = array<i64: 1, 16, 16>}, {transform_indices = @transform_1, window_bounds = array<i64: 1, 16, 16>}]} {
    %c0 = arith.constant 0 : index
    %c0_0 = arith.constant 0 : index
    %c0_1 = arith.constant 0 : index
    %0 = vector.load %arg3[%c0, %c0_0, %c0_1] : memref<1x16x16xf32, #tpu.memory_space<vmem>>, vector<1x16x16xf32>
    %1 = vector.shape_cast %0 : vector<1x16x16xf32> to vector<16x16xf32>
    %2 = tpu.transpose %1, [1, 0] : vector<16x16xf32> -> vector<16x16xf32>
    %c0_2 = arith.constant 0 : index
    %c0_3 = arith.constant 0 : index
    %c0_4 = arith.constant 0 : index
    %3 = vector.load %arg4[%c0_2, %c0_3, %c0_4] : memref<1x16x16xf32, #tpu.memory_space<vmem>>, vector<1x16x16xf32>
    %4 = vector.shape_cast %3 : vector<1x16x16xf32> to vector<16x16xf32>
    %5 = vector.shape_cast %2 : vector<16x16xf32> to vector<1x16x16xf32>
    tpu.vector_store %arg4[%c0_2, %c0_3, %c0_4], %5 {strides = array<i32>} : memref<1x16x16xf32, #tpu.memory_space<vmem>>, vector<1x16x16xf32>,
    return
  }
  func.func @transform_0(%arg0: i32, %arg1: i32, %arg2: i32) -> (i32, i32, i32) {
    %c0_i32 = arith.constant 0 : i32
    return %arg0, %arg1, %arg2 : i32, i32, i32
  }
  func.func @transform_1(%arg0: i32, %arg1: i32, %arg2: i32) -> (i32, i32, i32) {
    %c0_i32 = arith.constant 0 : i32
    return %arg0, %arg2, %arg1 : i32, i32, i32
  }
}

</mosaic_0001>

<llo_original>
// kernel: tpu_custom_call.1
$region0: #{tpu_custom_call.1}
  #allocation0 [shape = 'u32[]', space=smem, size = 0x4, offset = 0x4, fixed_abs, tag = 'smem constant byte address 0x4 - core index']
  #allocation1 [shape = 'u32[72,128]{1,0:T(1,128)}', space=vmem, size = 0x9000, scoped, tag = 'internal scratch']
  %s0 = inlined_call_operand.hbm [shape: f32[2,4,1,16,1,16], index: 0, kind: input, shape index: {}]
  %s1 = inlined_call_operand.hbm [shape: f32[2,16,1,4,1,16], index: 1, kind: output, shape index: {}]
  %s2 = sld [smem:[#allocation0]]
  $region41: #{tpu_custom_call.1} parent=0
    _
  %s4 = ssub.s32 1, %s2
  %s5 = scalar_select 0, %s4, %s2
  $region1: #{tpu_custom_call.1} parent=0
    #allocation2 [shape = 'u8[1024]{0}', space=vmem, size = 0x400, scoped, tag = 'input window, operand 0']
    #allocation3 [shape = 's32[2]{0}', space=sflag, size = 0x8, scoped, tag = 'scoped memory for tpu_custom_call.1']
    #allocation4 [shape = 's32[2]{0}', space=sflag, size = 0x8, scoped, tag = 'scoped memory for tpu_custom_call.1']
    #allocation5 [shape = 'u8[1024]{0}', space=vmem, size = 0x400, scoped, tag = 'output window, operand 0']
    %6 = vsyncpa [#allocation3], 0
    %s7 = scalar_lea.sflag [#allocation3], 1
    %8 = vsyncpa %s7, 0
    %9 = vsyncpa [#allocation4], 0
    %s10 = scalar_lea.sflag [#allocation4], 1
    %11 = vsyncpa %s10, 0
    loop: start=0, step=1, limit=130
    $region2: #{tpu_custom_call.1} parent=1 // loop_pre_header
      _
    $region3: #{tpu_custom_call.1} parent=1 // loop_header
      %s13 = sphi 0, %s17
      %p14 = scmp.ge.s32.totalorder %s13, 130
      %s20 = sphi 0, %s46
      %s21 = sphi 0, %s42
      %s22 = sphi 0, %s38
      %s23 = sphi 0, %s34
      %s24 = sphi 0, %s20
      %s25 = sphi 0, %s21
      %s26 = sphi 0, %s22
      %s27 = sphi 0, %s23
      %s28 = sphi 0, %s24
      %s29 = sphi 0, %s25
      %s30 = sphi 0, %s26
      %s31 = sphi 0, %s27
      %s55 = sphi 0, %s57
      %s58 = sphi 0, %s55
      %s59 = sphi 0, %s58
      %s75 = sphi 0, %s59
      %s87 = sphi 0, %s89
      %s90 = sphi 0, %s87
      %s91 = sphi 0, %s90
      %s107 = sphi 0, %s91
    $region4: #{tpu_custom_call.1} parent=1 // loop_header_branch
      %16 = sbr.rel (%p14) target = $region8
    $region5: #{tpu_custom_call.1} parent=1 // loop_body
      %s18 = ssub.s32 %s13, 1
      %s19 = ssub.s32 %s13, 2
      %s32 = sadd.s32 1, %s23
      %p33 = scmp.ge.s32.totalorder %s32, 16
      %s34 = scalar_select %p33, 0, %s32
      %s35 = sadd.s32 1, %s22
      %s36 = scalar_select %p33, %s35, %s22
      %p37 = scmp.ge.s32.totalorder %s36, 1
      %s38 = scalar_select %p37, 0, %s36
      %s39 = sadd.s32 1, %s21
      %s40 = scalar_select %p37, %s39, %s21
      %p41 = scmp.ge.s32.totalorder %s40, 4
      %s42 = scalar_select %p41, 0, %s40
      %s43 = sadd.s32 1, %s20
      %s44 = scalar_select %p41, %s43, %s20
      %p45 = scmp.ge.s32.totalorder %s44, 2
      %s46 = scalar_select %p45, 0, %s44
      %s47 = ssub.s32 %s20, %s46
      %s48 = ssub.s32 %s21, %s42
      %s49 = sor.u32 %s47, %s48
      %s50 = ssub.s32 %s22, %s38
      %s51 = sor.u32 %s49, %s50
      %s52 = ssub.s32 %s23, %s34
      %s53 = sor.u32 %s51, %s52
      %p54 = scmp.eq.s32.totalorder %s53, 0
      %s56 = sadd.s32 %s55, 1
      %s57 = scalar_select %p54, %s55, %s56
      %p60 = pneg %p54
      %p61 = scmp.eq.s32.totalorder %s13, 127
      %p62 = por %p60, %p61
      %p63 = scmp.ne.s32.totalorder %s55, %s58
      %p64 = scmp.eq.s32.totalorder %s13, 0
      %p65 = por %p63, %p64
      %p66 = scmp.ne.s32.totalorder %s55, %s58
      %p67 = scmp.eq.s32.totalorder %s18, 127
      %p68 = por %p66, %p67
      %p69 = scmp.ne.s32.totalorder %s58, %s59
      %p70 = scmp.eq.s32.totalorder %s18, 0
      %p71 = por %p69, %p70
      %p72 = scmp.ne.s32.totalorder %s58, %s59
      %p73 = scmp.eq.s32.totalorder %s19, 127
      %p74 = por %p72, %p73
      %p76 = scmp.ne.s32.totalorder %s59, %s75
      %p77 = scmp.eq.s32.totalorder %s19, 0
      %p78 = por %p76, %p77
      %s79 = ssub.s32 %s20, %s46
      %s80 = ssub.s32 %s23, %s34
      %s81 = sor.u32 %s79, %s80
      %s82 = ssub.s32 %s22, %s38
      %s83 = sor.u32 %s81, %s82
      %s84 = ssub.s32 %s21, %s42
      %s85 = sor.u32 %s83, %s84
      %p86 = scmp.eq.s32.totalorder %s85, 0
      %s88 = sadd.s32 %s87, 1
      %s89 = scalar_select %p86, %s87, %s88
      %p92 = pneg %p86
      %p93 = scmp.eq.s32.totalorder %s13, 127
      %p94 = por %p92, %p93
      %p95 = scmp.ne.s32.totalorder %s87, %s90
      %p96 = scmp.eq.s32.totalorder %s13, 0
      %p97 = por %p95, %p96
      %p98 = scmp.ne.s32.totalorder %s87, %s90
      %p99 = scmp.eq.s32.totalorder %s18, 127
      %p100 = por %p98, %p99
      %p101 = scmp.ne.s32.totalorder %s90, %s91
      %p102 = scmp.eq.s32.totalorder %s18, 0
      %p103 = por %p101, %p102
      %p104 = scmp.ne.s32.totalorder %s90, %s91
      %p105 = scmp.eq.s32.totalorder %s19, 127
      %p106 = por %p104, %p105
      %p108 = scmp.ne.s32.totalorder %s91, %s107
      %p109 = scmp.eq.s32.totalorder %s19, 0
      %p110 = por %p108, %p109
      %p111 = scmp.le.s32.totalorder 1, %s13
      %p112 = scmp.lt.s32.totalorder %s13, 129
      %p113 = pnand %p111, %p112
      %p114 = pneg %p113
      // Predicated region
      $region9: #{tpu_custom_call.1} parent=5 // pred_check
        _
      $region10: #{tpu_custom_call.1} parent=5 // pred_check_branch
        %116 = sbr.rel (%p113) target = $region12
      $region11: #{tpu_custom_call.1} parent=5 // pred_region
        %s117 = ssub.s32 %s13, 1
      $region12: #{tpu_custom_call.1} parent=5 // pred_fallthru
        _
      %p118 = scmp.lt.s32.totalorder %s13, 128
      // Predicated region
      $region13: #{tpu_custom_call.1} parent=5 // pred_check
        %p119 = pneg %p118
      $region14: #{tpu_custom_call.1} parent=5 // pred_check_branch
        %121 = sbr.rel (%p119) target = $region16
      $region15: #{tpu_custom_call.1} parent=5 // pred_region
        // Predicated region
        $region17: #{tpu_custom_call.1} parent=15 // pred_check
          %p122 = pneg %p65
        $region18: #{tpu_custom_call.1} parent=15 // pred_check_branch
          %124 = sbr.rel (%p122) target = $region20
        $region19: #{tpu_custom_call.1} parent=15 // pred_region
          %s125 = sand.u32 %s55, 1
          %s126 = scalar_lea.sflag [#allocation3], %s125
          %s127 = sand.u32 %s55, 1
          %s128 = scalar_lea.vmem [#allocation2], %s127
          %130 = vsyncadd %s126, 0
          %s131 = smul.addr %s22, 16
          %s132 = sadd.s32 %s23, %s131
          %s133 = smul.addr %s21, 16
          %s134 = sadd.s32 %s132, %s133
          %s135 = smul.addr %s20, 64
          %s136 = sadd.s32 %s134, %s135
          %s137 = scalar_lea.hbm %s0, %s136
          %s139 = sshll.u32 %s137, 4
          %s140 = int_to_ptr.hbm [resolvable:$true] %s139
          %s141 = sshll.u32 %s128, 4
          %s142 = int_to_ptr.vmem [resolvable:$true] %s141
          %144 = dma.hbm_to_vmem [thread:$0]  %s140, 16, %s142, %s126
        $region20: #{tpu_custom_call.1} parent=15 // pred_fallthru
          _
      $region16: #{tpu_custom_call.1} parent=5 // pred_fallthru
        _
      %p145 = scmp.le.s32.totalorder 1, %s13
      %p146 = scmp.lt.s32.totalorder %s13, 129
      %p147 = pnand %p145, %p146
      %p148 = pneg %p147
      // Predicated region
      $region21: #{tpu_custom_call.1} parent=5 // pred_check
        _
      $region22: #{tpu_custom_call.1} parent=5 // pred_check_branch
        %150 = sbr.rel (%p147) target = $region24
      $region23: #{tpu_custom_call.1} parent=5 // pred_region
        %s151 = ssub.s32 %s13, 1
        %s152 = sand.u32 %s58, 1
        %s153 = scalar_lea.sflag [#allocation3], %s152
        %s154 = sand.u32 %s58, 1
        %s155 = scalar_lea.vmem [#allocation2], %s154
        // Predicated region
        $region25: #{tpu_custom_call.1} parent=23 // pred_check
          %p156 = pneg %p71
        $region26: #{tpu_custom_call.1} parent=23 // pred_check_branch
          %158 = sbr.rel (%p156) target = $region28
        $region27: #{tpu_custom_call.1} parent=23 // pred_region
          %160 = dma.done %s153, 16
        $region28: #{tpu_custom_call.1} parent=23 // pred_fallthru
          _
        %s161 = sand.u32 %s58, 1
        %s162 = scalar_lea.sflag [#allocation3], %s161
        %s163 = sand.u32 %s58, 1
        %s164 = scalar_lea.vmem [#allocation2], %s163
        %p165 = pneg %p71
        %p166 = pneg %p68
        %p167 = pneg %p103
        %p168 = pneg %p100
        %s169 = sand.u32 %s90, 1
        %s170 = scalar_lea.sflag [#allocation4], %s169
        %s171 = sand.u32 %s90, 1
        %s172 = scalar_lea.vmem [#allocation5], %s171
        %v173 = vld [vmem:[%s155] sm:$0x1]
        %vm174 = vcmask 122880
        %175 = vst.msk [vmem:[%s172] sm:$0x1] %vm174, %v173
        %s176 = sand.u32 %s90, 1
        %s177 = scalar_lea.sflag [#allocation4], %s176
        %s178 = sand.u32 %s90, 1
        %s179 = scalar_lea.vmem [#allocation5], %s178
        // Predicated region
        $region29: #{tpu_custom_call.1} parent=23 // pred_check
          %p180 = pneg %p100
        $region30: #{tpu_custom_call.1} parent=23 // pred_check_branch
          %182 = sbr.rel (%p180) target = $region32
        $region31: #{tpu_custom_call.1} parent=23 // pred_region
          %184 = vsyncadd %s177, 0
          %s185 = smul.addr %s26, 4
          %s186 = sadd.s32 %s25, %s185
          %s187 = smul.addr %s27, 4
          %s188 = sadd.s32 %s186, %s187
          %s189 = smul.addr %s24, 64
          %s190 = sadd.s32 %s188, %s189
          %s191 = scalar_lea.hbm %s1, %s190
          %s193 = sshll.u32 %s179, 4
          %s194 = int_to_ptr.vmem [resolvable:$true] %s193
          %s195 = sshll.u32 %s191, 4
          %s196 = int_to_ptr.hbm [resolvable:$true] %s195
          %198 = dma.vmem_to_hbm [thread:$0]  %s194, 16, %s196, %s177
        $region32: #{tpu_custom_call.1} parent=23 // pred_fallthru
          _
      $region24: #{tpu_custom_call.1} parent=5 // pred_fallthru
        _
      %p199 = scmp.le.s32.totalorder 2, %s13
      // Predicated region
      $region33: #{tpu_custom_call.1} parent=5 // pred_check
        %p200 = pneg %p199
      $region34: #{tpu_custom_call.1} parent=5 // pred_check_branch
        %202 = sbr.rel (%p200) target = $region36
      $region35: #{tpu_custom_call.1} parent=5 // pred_region
        %s203 = ssub.s32 %s13, 2
        // Predicated region
        $region37: #{tpu_custom_call.1} parent=35 // pred_check
          %p204 = pneg %p106
        $region38: #{tpu_custom_call.1} parent=35 // pred_check_branch
          %206 = sbr.rel (%p204) target = $region40
        $region39: #{tpu_custom_call.1} parent=35 // pred_region
          %s207 = sand.u32 %s91, 1
          %s208 = scalar_lea.sflag [#allocation4], %s207
          %s209 = sand.u32 %s91, 1
          %s210 = scalar_lea.vmem [#allocation5], %s209
          %212 = dma.done %s208, 16
        $region40: #{tpu_custom_call.1} parent=35 // pred_fallthru
          _
      $region36: #{tpu_custom_call.1} parent=5 // pred_fallthru
        _
    $region6: #{tpu_custom_call.1} parent=1 // loop_footer
      %s17 = sadd.s32 1, %s13
    $region7: #{tpu_custom_call.1} parent=1 // loop_footer_branch
      %12 = sbr.rel target = $region3
    $region8: #{tpu_custom_call.1} parent=1 // loop_exit
      _
    %213 = vsyncpa [#allocation3], 1
    %s214 = scalar_lea.sflag [#allocation3], 1
    %215 = vsyncpa %s214, 1
    %216 = vsyncpa [#allocation4], 1
    %s217 = scalar_lea.sflag [#allocation4], 1
    %218 = vsyncpa %s217, 1

// kernel: tpu_custom_call.1
$region0: #{tpu_custom_call.1}
  #allocation0 [shape = 'u32[]', space=smem, size = 0x4, offset = 0x4, fixed_abs, tag = 'smem constant byte address 0x4 - core index']
  #allocation1 [shape = 'u32[72,128]{1,0:T(1,128)}', space=vmem, size = 0x9000, scoped, tag = 'internal scratch']
  %s0 = inlined_call_operand.hbm [shape: f32[4,8,128], index: 0, kind: input, shape index: {}]
  %s1 = inlined_call_operand.vmem [shape: f32[4,128,8], index: 1, kind: output, shape index: {}]
  %s2 = sld [smem:[#allocation0]]
  $region18: #{tpu_custom_call.1} parent=0
    _
  %s4 = ssub.s32 1, %s2
  %s5 = scalar_select 0, %s4, %s2
  $region1: #{tpu_custom_call.1} parent=0
    #allocation2 [shape = 'u8[16384]{0}', space=vmem, size = 0x4000, scoped, tag = 'input window, operand 0, single buffered']
    #allocation3 [shape = 's32[1]{0}', space=sflag, size = 0x4, scoped, tag = 'scoped memory for tpu_custom_call.1']
    %6 = vsyncpa [#allocation3], 0
    // Predicated region
    $region2: #{tpu_custom_call.1} parent=1 // pred_check
      _
    $region3: #{tpu_custom_call.1} parent=1 // pred_check_branch
      %8 = sbr.rel (0) target = $region5
    $region4: #{tpu_custom_call.1} parent=1 // pred_region
      %10 = vsyncadd [#allocation3], 0
      %s11 = sshll.u32 %s0, 4
      %s12 = int_to_ptr.hbm [resolvable:$true] %s11
      %s13 = sshll.u32 [#allocation2], 4
      %s14 = int_to_ptr.vmem [resolvable:$true] %s13
      %19 = dma.hbm_to_vmem [thread:$0]  %s12, 512, %s14, [#allocation3], 128, 128, 8
    $region5: #{tpu_custom_call.1} parent=1 // pred_fallthru
      _
    // Predicated region
    $region6: #{tpu_custom_call.1} parent=1 // pred_check
      _
    $region7: #{tpu_custom_call.1} parent=1 // pred_check_branch
      %21 = sbr.rel (0) target = $region9
    $region8: #{tpu_custom_call.1} parent=1 // pred_region
      %23 = dma.done [#allocation3], 512
    $region9: #{tpu_custom_call.1} parent=1 // pred_fallthru
      _
    %v24 = vld [vmem:[#allocation2] sm:$0xff]
    %v25 = vld [vmem:[#allocation2 + $0x8] sm:$0xff]
    %v26 = vld [vmem:[#allocation2 + $0x10] sm:$0xff]
    %v27 = vld [vmem:[#allocation2 + $0x18] sm:$0xff]
    %28 = vxpose.xlu0.b32.start [1/16] %v24, 128
    %29 = vxpose.xlu0.b32.cont [2/16] 0.0, 128
    %30 = vxpose.xlu0.b32.cont [3/16] 0.0, 128
    %31 = vxpose.xlu0.b32.cont [4/16] 0.0, 128
    %32 = vxpose.xlu0.b32.cont [5/16] 0.0, 128
    %33 = vxpose.xlu0.b32.cont [6/16] 0.0, 128
    %34 = vxpose.xlu0.b32.cont [7/16] 0.0, 128
    %35 = vxpose.xlu0.b32.cont [8/16] 0.0, 128
    %36 = vxpose.xlu0.b32.cont [9/16] 0.0, 128
    %37 = vxpose.xlu0.b32.cont [10/16] 0.0, 128
    %38 = vxpose.xlu0.b32.cont [11/16] 0.0, 128
    %39 = vxpose.xlu0.b32.cont [12/16] 0.0, 128
    %40 = vxpose.xlu0.b32.cont [13/16] 0.0, 128
    %41 = vxpose.xlu0.b32.cont [14/16] 0.0, 128
    %42 = vxpose.xlu0.b32.cont [15/16] 0.0, 128
    %43 = vxpose.xlu0.b32.end [16/16] 0.0, 128
    %v44 = vpop.trf.xlu0
    %v45 = vpop.trf.xlu0
    %v46 = vpop.trf.xlu0
    %v47 = vpop.trf.xlu0
    %v48 = vpop.trf.xlu0
    %v49 = vpop.trf.xlu0
    %v50 = vpop.trf.xlu0
    %v51 = vpop.trf.xlu0
    %v52 = vpop.trf.xlu0
    %v53 = vpop.trf.xlu0
    %v54 = vpop.trf.xlu0
    %v55 = vpop.trf.xlu0
    %v56 = vpop.trf.xlu0
    %v57 = vpop.trf.xlu0
    %v58 = vpop.trf.xlu0
    %v59 = vpop.trf.xlu0
    %60 = vxpose.xlu0.b32.start [1/16] %v25, 128
    %61 = vxpose.xlu0.b32.cont [2/16] 0.0, 128
    %62 = vxpose.xlu0.b32.cont [3/16] 0.0, 128
    %63 = vxpose.xlu0.b32.cont [4/16] 0.0, 128
    %64 = vxpose.xlu0.b32.cont [5/16] 0.0, 128
    %65 = vxpose.xlu0.b32.cont [6/16] 0.0, 128
    %66 = vxpose.xlu0.b32.cont [7/16] 0.0, 128
    %67 = vxpose.xlu0.b32.cont [8/16] 0.0, 128
    %68 = vxpose.xlu0.b32.cont [9/16] 0.0, 128
    %69 = vxpose.xlu0.b32.cont [10/16] 0.0, 128
    %70 = vxpose.xlu0.b32.cont [11/16] 0.0, 128
    %71 = vxpose.xlu0.b32.cont [12/16] 0.0, 128
    %72 = vxpose.xlu0.b32.cont [13/16] 0.0, 128
    %73 = vxpose.xlu0.b32.cont [14/16] 0.0, 128
    %74 = vxpose.xlu0.b32.cont [15/16] 0.0, 128
    %75 = vxpose.xlu0.b32.end [16/16] 0.0, 128
    %v76 = vpop.trf.xlu0
    %v77 = vpop.trf.xlu0
    %v78 = vpop.trf.xlu0
    %v79 = vpop.trf.xlu0
    %v80 = vpop.trf.xlu0
    %v81 = vpop.trf.xlu0
    %v82 = vpop.trf.xlu0
    %v83 = vpop.trf.xlu0
    %v84 = vpop.trf.xlu0
    %v85 = vpop.trf.xlu0
    %v86 = vpop.trf.xlu0
    %v87 = vpop.trf.xlu0
    %v88 = vpop.trf.xlu0
    %v89 = vpop.trf.xlu0
    %v90 = vpop.trf.xlu0
    %v91 = vpop.trf.xlu0
    %92 = vxpose.xlu0.b32.start [1/16] %v26, 128
    %93 = vxpose.xlu0.b32.cont [2/16] 0.0, 128
    %94 = vxpose.xlu0.b32.cont [3/16] 0.0, 128
    %95 = vxpose.xlu0.b32.cont [4/16] 0.0, 128
    %96 = vxpose.xlu0.b32.cont [5/16] 0.0, 128
    %97 = vxpose.xlu0.b32.cont [6/16] 0.0, 128
    %98 = vxpose.xlu0.b32.cont [7/16] 0.0, 128
    %99 = vxpose.xlu0.b32.cont [8/16] 0.0, 128
    %100 = vxpose.xlu0.b32.cont [9/16] 0.0, 128
    %101 = vxpose.xlu0.b32.cont [10/16] 0.0, 128
    %102 = vxpose.xlu0.b32.cont [11/16] 0.0, 128
    %103 = vxpose.xlu0.b32.cont [12/16] 0.0, 128
    %104 = vxpose.xlu0.b32.cont [13/16] 0.0, 128
    %105 = vxpose.xlu0.b32.cont [14/16] 0.0, 128
    %106 = vxpose.xlu0.b32.cont [15/16] 0.0, 128
    %107 = vxpose.xlu0.b32.end [16/16] 0.0, 128
    %v108 = vpop.trf.xlu0
    %v109 = vpop.trf.xlu0
    %v110 = vpop.trf.xlu0
    %v111 = vpop.trf.xlu0
    %v112 = vpop.trf.xlu0
    %v113 = vpop.trf.xlu0
    %v114 = vpop.trf.xlu0
    %v115 = vpop.trf.xlu0
    %v116 = vpop.trf.xlu0
    %v117 = vpop.trf.xlu0
    %v118 = vpop.trf.xlu0
    %v119 = vpop.trf.xlu0
    %v120 = vpop.trf.xlu0
    %v121 = vpop.trf.xlu0
    %v122 = vpop.trf.xlu0
    %v123 = vpop.trf.xlu0
    %124 = vxpose.xlu0.b32.start [1/16] %v27, 128
    %125 = vxpose.xlu0.b32.cont [2/16] 0.0, 128
    %126 = vxpose.xlu0.b32.cont [3/16] 0.0, 128
    %127 = vxpose.xlu0.b32.cont [4/16] 0.0, 128
    %128 = vxpose.xlu0.b32.cont [5/16] 0.0, 128
    %129 = vxpose.xlu0.b32.cont [6/16] 0.0, 128
    %130 = vxpose.xlu0.b32.cont [7/16] 0.0, 128
    %131 = vxpose.xlu0.b32.cont [8/16] 0.0, 128
    %132 = vxpose.xlu0.b32.cont [9/16] 0.0, 128
    %133 = vxpose.xlu0.b32.cont [10/16] 0.0, 128
    %134 = vxpose.xlu0.b32.cont [11/16] 0.0, 128
    %135 = vxpose.xlu0.b32.cont [12/16] 0.0, 128
    %136 = vxpose.xlu0.b32.cont [13/16] 0.0, 128
    %137 = vxpose.xlu0.b32.cont [14/16] 0.0, 128
    %138 = vxpose.xlu0.b32.cont [15/16] 0.0, 128
    %139 = vxpose.xlu0.b32.end [16/16] 0.0, 128
    %v140 = vpop.trf.xlu0
    %v141 = vpop.trf.xlu0
    %v142 = vpop.trf.xlu0
    %v143 = vpop.trf.xlu0
    %v144 = vpop.trf.xlu0
    %v145 = vpop.trf.xlu0
    %v146 = vpop.trf.xlu0
    %v147 = vpop.trf.xlu0
    %v148 = vpop.trf.xlu0
    %v149 = vpop.trf.xlu0
    %v150 = vpop.trf.xlu0
    %v151 = vpop.trf.xlu0
    %v152 = vpop.trf.xlu0
    %v153 = vpop.trf.xlu0
    %v154 = vpop.trf.xlu0
    %v155 = vpop.trf.xlu0
    %vm156 = vcmask 64512
    %157 = vst.msk [vmem:[%s1] sm:$0xff] %vm156, %v44
    %158 = vst.msk [vmem:[%s1 + $0x8] sm:$0xff] %vm156, %v45
    %159 = vst.msk [vmem:[%s1 + $0x10] sm:$0xff] %vm156, %v46
    %160 = vst.msk [vmem:[%s1 + $0x18] sm:$0xff] %vm156, %v47
    %161 = vst.msk [vmem:[%s1 + $0x20] sm:$0xff] %vm156, %v48
    %162 = vst.msk [vmem:[%s1 + $0x28] sm:$0xff] %vm156, %v49
    %163 = vst.msk [vmem:[%s1 + $0x30] sm:$0xff] %vm156, %v50
    %164 = vst.msk [vmem:[%s1 + $0x38] sm:$0xff] %vm156, %v51
    %165 = vst.msk [vmem:[%s1 + $0x40] sm:$0xff] %vm156, %v52
    %166 = vst.msk [vmem:[%s1 + $0x48] sm:$0xff] %vm156, %v53
    %167 = vst.msk [vmem:[%s1 + $0x50] sm:$0xff] %vm156, %v54
    %168 = vst.msk [vmem:[%s1 + $0x58] sm:$0xff] %vm156, %v55
    %169 = vst.msk [vmem:[%s1 + $0x60] sm:$0xff] %vm156, %v56
    %170 = vst.msk [vmem:[%s1 + $0x68] sm:$0xff] %vm156, %v57
    %171 = vst.msk [vmem:[%s1 + $0x70] sm:$0xff] %vm156, %v58
    %172 = vst.msk [vmem:[%s1 + $0x78] sm:$0xff] %vm156, %v59
    %173 = vst.msk [vmem:[%s1 + $0x80] sm:$0xff] %vm156, %v76
    %174 = vst.msk [vmem:[%s1 + $0x88] sm:$0xff] %vm156, %v77
    %175 = vst.msk [vmem:[%s1 + $0x90] sm:$0xff] %vm156, %v78
    %176 = vst.msk [vmem:[%s1 + $0x98] sm:$0xff] %vm156, %v79
    %177 = vst.msk [vmem:[%s1 + $0xa0] sm:$0xff] %vm156, %v80
    %178 = vst.msk [vmem:[%s1 + $0xa8] sm:$0xff] %vm156, %v81
    %179 = vst.msk [vmem:[%s1 + $0xb0] sm:$0xff] %vm156, %v82
    %180 = vst.msk [vmem:[%s1 + $0xb8] sm:$0xff] %vm156, %v83
    %181 = vst.msk [vmem:[%s1 + $0xc0] sm:$0xff] %vm156, %v84
    %182 = vst.msk [vmem:[%s1 + $0xc8] sm:$0xff] %vm156, %v85
    %183 = vst.msk [vmem:[%s1 + $0xd0] sm:$0xff] %vm156, %v86
    %184 = vst.msk [vmem:[%s1 + $0xd8] sm:$0xff] %vm156, %v87
    %185 = vst.msk [vmem:[%s1 + $0xe0] sm:$0xff] %vm156, %v88
    %186 = vst.msk [vmem:[%s1 + $0xe8] sm:$0xff] %vm156, %v89
    %187 = vst.msk [vmem:[%s1 + $0xf0] sm:$0xff] %vm156, %v90
    %188 = vst.msk [vmem:[%s1 + $0xf8] sm:$0xff] %vm156, %v91
    %189 = vst.msk [vmem:[%s1 + $0x100] sm:$0xff] %vm156, %v108
    %190 = vst.msk [vmem:[%s1 + $0x108] sm:$0xff] %vm156, %v109
    %191 = vst.msk [vmem:[%s1 + $0x110] sm:$0xff] %vm156, %v110
    %192 = vst.msk [vmem:[%s1 + $0x118] sm:$0xff] %vm156, %v111
    %193 = vst.msk [vmem:[%s1 + $0x120] sm:$0xff] %vm156, %v112
    %194 = vst.msk [vmem:[%s1 + $0x128] sm:$0xff] %vm156, %v113
    %195 = vst.msk [vmem:[%s1 + $0x130] sm:$0xff] %vm156, %v114
    %196 = vst.msk [vmem:[%s1 + $0x138] sm:$0xff] %vm156, %v115
    %197 = vst.msk [vmem:[%s1 + $0x140] sm:$0xff] %vm156, %v116
    %198 = vst.msk [vmem:[%s1 + $0x148] sm:$0xff] %vm156, %v117
    %199 = vst.msk [vmem:[%s1 + $0x150] sm:$0xff] %vm156, %v118
    %200 = vst.msk [vmem:[%s1 + $0x158] sm:$0xff] %vm156, %v119
    %201 = vst.msk [vmem:[%s1 + $0x160] sm:$0xff] %vm156, %v120
    %202 = vst.msk [vmem:[%s1 + $0x168] sm:$0xff] %vm156, %v121
    %203 = vst.msk [vmem:[%s1 + $0x170] sm:$0xff] %vm156, %v122
    %204 = vst.msk [vmem:[%s1 + $0x178] sm:$0xff] %vm156, %v123
    %205 = vst.msk [vmem:[%s1 + $0x180] sm:$0xff] %vm156, %v140
    %206 = vst.msk [vmem:[%s1 + $0x188] sm:$0xff] %vm156, %v141
    %207 = vst.msk [vmem:[%s1 + $0x190] sm:$0xff] %vm156, %v142
    %208 = vst.msk [vmem:[%s1 + $0x198] sm:$0xff] %vm156, %v143
    %209 = vst.msk [vmem:[%s1 + $0x1a0] sm:$0xff] %vm156, %v144
    %210 = vst.msk [vmem:[%s1 + $0x1a8] sm:$0xff] %vm156, %v145
    %211 = vst.msk [vmem:[%s1 + $0x1b0] sm:$0xff] %vm156, %v146
    %212 = vst.msk [vmem:[%s1 + $0x1b8] sm:$0xff] %vm156, %v147
    %213 = vst.msk [vmem:[%s1 + $0x1c0] sm:$0xff] %vm156, %v148
    %214 = vst.msk [vmem:[%s1 + $0x1c8] sm:$0xff] %vm156, %v149
    %215 = vst.msk [vmem:[%s1 + $0x1d0] sm:$0xff] %vm156, %v150
    %216 = vst.msk [vmem:[%s1 + $0x1d8] sm:$0xff] %vm156, %v151
    %217 = vst.msk [vmem:[%s1 + $0x1e0] sm:$0xff] %vm156, %v152
    %218 = vst.msk [vmem:[%s1 + $0x1e8] sm:$0xff] %vm156, %v153
    %219 = vst.msk [vmem:[%s1 + $0x1f0] sm:$0xff] %vm156, %v154
    %220 = vst.msk [vmem:[%s1 + $0x1f8] sm:$0xff] %vm156, %v155
    // Predicated region
    $region10: #{tpu_custom_call.1} parent=1 // pred_check
      _
    $region11: #{tpu_custom_call.1} parent=1 // pred_check_branch
      %222 = sbr.rel (0) target = $region13
    $region12: #{tpu_custom_call.1} parent=1 // pred_region
      _
    $region13: #{tpu_custom_call.1} parent=1 // pred_fallthru
      _
    // Predicated region
    $region14: #{tpu_custom_call.1} parent=1 // pred_check
      _
    $region15: #{tpu_custom_call.1} parent=1 // pred_check_branch
      %224 = sbr.rel (0) target = $region17
    $region16: #{tpu_custom_call.1} parent=1 // pred_region
      _
    $region17: #{tpu_custom_call.1} parent=1 // pred_fallthru
      _
    %225 = vsyncpa [#allocation3], 1

// kernel: tpu_custom_call.1
$region0: #{tpu_custom_call.1}
  #allocation0 [shape = 'u32[]', space=smem, size = 0x4, offset = 0x4, fixed_abs, tag = 'smem constant byte address 0x4 - core index']
  #allocation1 [shape = 'u32[72,128]{1,0:T(1,128)}', space=vmem, size = 0x9000, scoped, tag = 'internal scratch']
  %s0 = inlined_call_operand.hbm [shape: f32[8,16,16], index: 0, kind: input, shape index: {}]
  %s1 = inlined_call_operand.hbm [shape: f32[8,16,16], index: 1, kind: output, shape index: {}]
  %s2 = sld [smem:[#allocation0]]
  $region41: #{tpu_custom_call.1} parent=0
    _
  %s4 = ssub.s32 1, %s2
  %s5 = scalar_select 0, %s4, %s2
  $region1: #{tpu_custom_call.1} parent=0
    #allocation2 [shape = 'u8[16384]{0}', space=vmem, size = 0x4000, scoped, tag = 'input window, operand 0']
    #allocation3 [shape = 's32[2]{0}', space=sflag, size = 0x8, scoped, tag = 'scoped memory for tpu_custom_call.1']
    #allocation4 [shape = 's32[2]{0}', space=sflag, size = 0x8, scoped, tag = 'scoped memory for tpu_custom_call.1']
    #allocation5 [shape = 'u8[16384]{0}', space=vmem, size = 0x4000, scoped, tag = 'output window, operand 0']
    %6 = vsyncpa [#allocation3], 0
    %s7 = scalar_lea.sflag [#allocation3], 1
    %8 = vsyncpa %s7, 0
    %9 = vsyncpa [#allocation4], 0
    %s10 = scalar_lea.sflag [#allocation4], 1
    %11 = vsyncpa %s10, 0
    loop: start=0, step=1, limit=10
    $region2: #{tpu_custom_call.1} parent=1 // loop_pre_header
      _
    $region3: #{tpu_custom_call.1} parent=1 // loop_header
      %s13 = sphi 0, %s17
      %p14 = scmp.ge.s32.totalorder %s13, 10
      %s20 = sphi 0, %s39
      %s21 = sphi 0, %s35
      %s22 = sphi 0, %s31
      %s23 = sphi 0, %s20
      %s24 = sphi 0, %s21
      %s25 = sphi 0, %s22
      %s26 = sphi 0, %s23
      %s27 = sphi 0, %s24
      %s28 = sphi 0, %s25
      %s46 = sphi 0, %s48
      %s49 = sphi 0, %s46
      %s50 = sphi 0, %s49
      %s66 = sphi 0, %s50
      %s76 = sphi 0, %s78
      %s79 = sphi 0, %s76
      %s80 = sphi 0, %s79
      %s96 = sphi 0, %s80
    $region4: #{tpu_custom_call.1} parent=1 // loop_header_branch
      %16 = sbr.rel (%p14) target = $region8
    $region5: #{tpu_custom_call.1} parent=1 // loop_body
      %s18 = ssub.s32 %s13, 1
      %s19 = ssub.s32 %s13, 2
      %s29 = sadd.s32 1, %s22
      %p30 = scmp.ge.s32.totalorder %s29, 1
      %s31 = scalar_select %p30, 0, %s29
      %s32 = sadd.s32 1, %s21
      %s33 = scalar_select %p30, %s32, %s21
      %p34 = scmp.ge.s32.totalorder %s33, 1
      %s35 = scalar_select %p34, 0, %s33
      %s36 = sadd.s32 1, %s20
      %s37 = scalar_select %p34, %s36, %s20
      %p38 = scmp.ge.s32.totalorder %s37, 8
      %s39 = scalar_select %p38, 0, %s37
      %s40 = ssub.s32 %s20, %s39
      %s41 = ssub.s32 %s21, %s35
      %s42 = sor.u32 %s40, %s41
      %s43 = ssub.s32 %s22, %s31
      %s44 = sor.u32 %s42, %s43
      %p45 = scmp.eq.s32.totalorder %s44, 0
      %s47 = sadd.s32 %s46, 1
      %s48 = scalar_select %p45, %s46, %s47
      %p51 = pneg %p45
      %p52 = scmp.eq.s32.totalorder %s13, 7
      %p53 = por %p51, %p52
      %p54 = scmp.ne.s32.totalorder %s46, %s49
      %p55 = scmp.eq.s32.totalorder %s13, 0
      %p56 = por %p54, %p55
      %p57 = scmp.ne.s32.totalorder %s46, %s49
      %p58 = scmp.eq.s32.totalorder %s18, 7
      %p59 = por %p57, %p58
      %p60 = scmp.ne.s32.totalorder %s49, %s50
      %p61 = scmp.eq.s32.totalorder %s18, 0
      %p62 = por %p60, %p61
      %p63 = scmp.ne.s32.totalorder %s49, %s50
      %p64 = scmp.eq.s32.totalorder %s19, 7
      %p65 = por %p63, %p64
      %p67 = scmp.ne.s32.totalorder %s50, %s66
      %p68 = scmp.eq.s32.totalorder %s19, 0
      %p69 = por %p67, %p68
      %s70 = ssub.s32 %s20, %s39
      %s71 = ssub.s32 %s22, %s31
      %s72 = sor.u32 %s70, %s71
      %s73 = ssub.s32 %s21, %s35
      %s74 = sor.u32 %s72, %s73
      %p75 = scmp.eq.s32.totalorder %s74, 0
      %s77 = sadd.s32 %s76, 1
      %s78 = scalar_select %p75, %s76, %s77
      %p81 = pneg %p75
      %p82 = scmp.eq.s32.totalorder %s13, 7
      %p83 = por %p81, %p82
      %p84 = scmp.ne.s32.totalorder %s76, %s79
      %p85 = scmp.eq.s32.totalorder %s13, 0
      %p86 = por %p84, %p85
      %p87 = scmp.ne.s32.totalorder %s76, %s79
      %p88 = scmp.eq.s32.totalorder %s18, 7
      %p89 = por %p87, %p88
      %p90 = scmp.ne.s32.totalorder %s79, %s80
      %p91 = scmp.eq.s32.totalorder %s18, 0
      %p92 = por %p90, %p91
      %p93 = scmp.ne.s32.totalorder %s79, %s80
      %p94 = scmp.eq.s32.totalorder %s19, 7
      %p95 = por %p93, %p94
      %p97 = scmp.ne.s32.totalorder %s80, %s96
      %p98 = scmp.eq.s32.totalorder %s19, 0
      %p99 = por %p97, %p98
      %p100 = scmp.le.s32.totalorder 1, %s13
      %p101 = scmp.lt.s32.totalorder %s13, 9
      %p102 = pnand %p100, %p101
      %p103 = pneg %p102
      // Predicated region
      $region9: #{tpu_custom_call.1} parent=5 // pred_check
        _
      $region10: #{tpu_custom_call.1} parent=5 // pred_check_branch
        %105 = sbr.rel (%p102) target = $region12
      $region11: #{tpu_custom_call.1} parent=5 // pred_region
        %s106 = ssub.s32 %s13, 1
      $region12: #{tpu_custom_call.1} parent=5 // pred_fallthru
        _
      %p107 = scmp.lt.s32.totalorder %s13, 8
      // Predicated region
      $region13: #{tpu_custom_call.1} parent=5 // pred_check
        %p108 = pneg %p107
      $region14: #{tpu_custom_call.1} parent=5 // pred_check_branch
        %110 = sbr.rel (%p108) target = $region16
      $region15: #{tpu_custom_call.1} parent=5 // pred_region
        // Predicated region
        $region17: #{tpu_custom_call.1} parent=15 // pred_check
          %p111 = pneg %p56
        $region18: #{tpu_custom_call.1} parent=15 // pred_check_branch
          %113 = sbr.rel (%p111) target = $region20
        $region19: #{tpu_custom_call.1} parent=15 // pred_region
          %s114 = sand.u32 %s46, 1
          %s115 = scalar_lea.sflag [#allocation3], %s114
          %s116 = sand.u32 %s46, 1
          %s117 = smul.addr %s116, 16
          %s118 = scalar_lea.vmem [#allocation2], %s117
          %s119 = smul.u32 2, %s21
          %121 = vsyncadd %s115, 0
          %s122 = sadd.s32 %s22, %s119
          %s123 = smul.addr %s20, 2
          %s124 = sadd.s32 %s122, %s123
          %s125 = smul.addr %s124, 8
          %s126 = scalar_lea.hbm %s0, %s125
          %s127 = sshll.u32 %s126, 4
          %s128 = int_to_ptr.hbm [resolvable:$true] %s127
          %s129 = sshll.u32 %s118, 4
          %s130 = int_to_ptr.vmem [resolvable:$true] %s129
          %135 = dma.hbm_to_vmem [thread:$0]  %s128, 256, %s130, %s115, 128, 128, 8
        $region20: #{tpu_custom_call.1} parent=15 // pred_fallthru
          _
      $region16: #{tpu_custom_call.1} parent=5 // pred_fallthru
        _
      %p136 = scmp.le.s32.totalorder 1, %s13
      %p137 = scmp.lt.s32.totalorder %s13, 9
      %p138 = pnand %p136, %p137
      %p139 = pneg %p138
      // Predicated region
      $region21: #{tpu_custom_call.1} parent=5 // pred_check
        _
      $region22: #{tpu_custom_call.1} parent=5 // pred_check_branch
        %141 = sbr.rel (%p138) target = $region24
      $region23: #{tpu_custom_call.1} parent=5 // pred_region
        %s142 = ssub.s32 %s13, 1
        %s143 = sand.u32 %s49, 1
        %s144 = scalar_lea.sflag [#allocation3], %s143
        %s145 = sand.u32 %s49, 1
        %s146 = smul.addr %s145, 16
        %s147 = scalar_lea.vmem [#allocation2], %s146
        // Predicated region
        $region25: #{tpu_custom_call.1} parent=23 // pred_check
          %p148 = pneg %p62
        $region26: #{tpu_custom_call.1} parent=23 // pred_check_branch
          %150 = sbr.rel (%p148) target = $region28
        $region27: #{tpu_custom_call.1} parent=23 // pred_region
          %152 = dma.done %s144, 256
        $region28: #{tpu_custom_call.1} parent=23 // pred_fallthru
          _
        %s153 = sand.u32 %s49, 1
        %s154 = scalar_lea.sflag [#allocation3], %s153
        %s155 = sand.u32 %s49, 1
        %s156 = smul.addr %s155, 16
        %s157 = scalar_lea.vmem [#allocation2], %s156
        %p158 = pneg %p62
        %p159 = pneg %p59
        %p160 = pneg %p92
        %p161 = pneg %p89
        %s162 = sand.u32 %s79, 1
        %s163 = scalar_lea.sflag [#allocation4], %s162
        %s164 = sand.u32 %s79, 1
        %s165 = smul.addr %s164, 16
        %s166 = scalar_lea.vmem [#allocation5], %s165
        %s167 = smul.u32 2, %s24
        %s168 = smul.u32 2, %s25
        %v169 = vld [vmem:[%s147] sm:$0xff]
        %v170 = vld [vmem:[%s147 + $0x8] sm:$0xff]
        %171 = vxpose.xlu0.b32.start [1/16] %v169, 128
        %172 = vxpose.xlu0.b32.cont [2/16] %v170, 128
        %173 = vxpose.xlu0.b32.cont [3/16] 0.0, 128
        %174 = vxpose.xlu0.b32.cont [4/16] 0.0, 128
        %175 = vxpose.xlu0.b32.cont [5/16] 0.0, 128
        %176 = vxpose.xlu0.b32.cont [6/16] 0.0, 128
        %177 = vxpose.xlu0.b32.cont [7/16] 0.0, 128
        %178 = vxpose.xlu0.b32.cont [8/16] 0.0, 128
        %179 = vxpose.xlu0.b32.cont [9/16] 0.0, 128
        %180 = vxpose.xlu0.b32.cont [10/16] 0.0, 128
        %181 = vxpose.xlu0.b32.cont [11/16] 0.0, 128
        %182 = vxpose.xlu0.b32.cont [12/16] 0.0, 128
        %183 = vxpose.xlu0.b32.cont [13/16] 0.0, 128
        %184 = vxpose.xlu0.b32.cont [14/16] 0.0, 128
        %185 = vxpose.xlu0.b32.cont [15/16] 0.0, 128
        %186 = vxpose.xlu0.b32.end [16/16] 0.0, 128
        %v187 = vpop.trf.xlu0
        %v188 = vpop.trf.xlu0
        %v189 = vpop.trf.xlu0
        %v190 = vpop.trf.xlu0
        %v191 = vpop.trf.xlu0
        %v192 = vpop.trf.xlu0
        %v193 = vpop.trf.xlu0
        %v194 = vpop.trf.xlu0
        %v195 = vpop.trf.xlu0
        %v196 = vpop.trf.xlu0
        %v197 = vpop.trf.xlu0
        %v198 = vpop.trf.xlu0
        %v199 = vpop.trf.xlu0
        %v200 = vpop.trf.xlu0
        %v201 = vpop.trf.xlu0
        %v202 = vpop.trf.xlu0
        %vm203 = vcmask 130048
        %204 = vst.msk [vmem:[%s166] sm:$0xff] %vm203, %v187
        %205 = vst.msk [vmem:[%s166 + $0x8] sm:$0xff] %vm203, %v188
        %s206 = sand.u32 %s79, 1
        %s207 = scalar_lea.sflag [#allocation4], %s206
        %s208 = sand.u32 %s79, 1
        %s209 = smul.addr %s208, 16
        %s210 = scalar_lea.vmem [#allocation5], %s209
        // Predicated region
        $region29: #{tpu_custom_call.1} parent=23 // pred_check
          %p211 = pneg %p89
        $region30: #{tpu_custom_call.1} parent=23 // pred_check_branch
          %213 = sbr.rel (%p211) target = $region32
        $region31: #{tpu_custom_call.1} parent=23 // pred_region
          %s214 = smul.u32 2, %s25
          %216 = vsyncadd %s207, 0
          %s217 = sadd.s32 %s24, %s214
          %s218 = smul.addr %s23, 2
          %s219 = sadd.s32 %s217, %s218
          %s220 = smul.addr %s219, 8
          %s221 = scalar_lea.hbm %s1, %s220
          %s222 = sshll.u32 %s210, 4
          %s223 = int_to_ptr.vmem [resolvable:$true] %s222
          %s224 = sshll.u32 %s221, 4
          %s225 = int_to_ptr.hbm [resolvable:$true] %s224
          %230 = dma.vmem_to_hbm [thread:$0]  %s223, 256, %s225, %s207, 128, 128, 8
        $region32: #{tpu_custom_call.1} parent=23 // pred_fallthru
          _
      $region24: #{tpu_custom_call.1} parent=5 // pred_fallthru
        _
      %p231 = scmp.le.s32.totalorder 2, %s13
      // Predicated region
      $region33: #{tpu_custom_call.1} parent=5 // pred_check
        %p232 = pneg %p231
      $region34: #{tpu_custom_call.1} parent=5 // pred_check_branch
        %234 = sbr.rel (%p232) target = $region36
      $region35: #{tpu_custom_call.1} parent=5 // pred_region
        %s235 = ssub.s32 %s13, 2
        // Predicated region
        $region37: #{tpu_custom_call.1} parent=35 // pred_check
          %p236 = pneg %p95
        $region38: #{tpu_custom_call.1} parent=35 // pred_check_branch
          %238 = sbr.rel (%p236) target = $region40
        $region39: #{tpu_custom_call.1} parent=35 // pred_region
          %s239 = sand.u32 %s80, 1
          %s240 = scalar_lea.sflag [#allocation4], %s239
          %s241 = sand.u32 %s80, 1
          %s242 = smul.addr %s241, 16
          %s243 = scalar_lea.vmem [#allocation5], %s242
          %245 = dma.done %s240, 256
        $region40: #{tpu_custom_call.1} parent=35 // pred_fallthru
          _
      $region36: #{tpu_custom_call.1} parent=5 // pred_fallthru
        _
    $region6: #{tpu_custom_call.1} parent=1 // loop_footer
      %s17 = sadd.s32 1, %s13
    $region7: #{tpu_custom_call.1} parent=1 // loop_footer_branch
      %12 = sbr.rel target = $region3
    $region8: #{tpu_custom_call.1} parent=1 // loop_exit
      _
    %246 = vsyncpa [#allocation3], 1
    %s247 = scalar_lea.sflag [#allocation3], 1
    %248 = vsyncpa %s247, 1
    %249 = vsyncpa [#allocation4], 1
    %s250 = scalar_lea.sflag [#allocation4], 1
    %251 = vsyncpa %s250, 1

</llo_original>
